<compile_context>
chip_gen: v5e
topology: v5e:2x2
jax: 0.10.0
libtpu: 0.0.40
codegen_flags: <defaults>
</compile_context>

<pallas_src>
import math

import jax
import jax.numpy as jnp
from jax.experimental import pallas as pl
from jax.experimental.pallas import tpu as pltpu


def _gcn_sim_kernel(sim_ref, emb_ref, w_ref, lin_bias_ref, bias_ref, alpha_ref,
                    out_ref, acc_ref):
    """One (row-tile i, k-tile) step of PReLU(sim @ (emb @ W + lin_b) + b)."""
    k = pl.program_id(1)

    @pl.when(k == 0)
    def _init():
        acc_ref[...] = jnp.zeros_like(acc_ref)

    # h_k = emb[k-tile] @ W_fused + lin_bias      (cheap: TK x C x 64)
    h = jnp.dot(emb_ref[...], w_ref[...], preferred_element_type=jnp.float32)
    h = h + lin_bias_ref[...]

    # partial_out += sim[i-tile, k-tile] @ h_k    (dominant: TM x TK x 64)
    acc_ref[...] += jnp.dot(sim_ref[...], h.astype(sim_ref.dtype),
                            preferred_element_type=jnp.float32)

    @pl.when(k == pl.num_programs(1) - 1)
    def _finalize():
        o = acc_ref[...] + bias_ref[...]
        alpha = alpha_ref[0, 0]
        out_ref[...] = jnp.where(o >= 0.0, o, alpha * o).astype(out_ref.dtype)


def gcn_sim_forward(emb, sim, w_fc, w_lin, lin_bias, bias, alpha,
                    *, compute_dtype=jnp.float32, tm=256, tk=512,
                    vmem_limit_bytes=None):
    """Fused GCN_sim forward. Weights are given in PyTorch (out, in) layout."""
    N, C = emb.shape
    H = w_lin.shape[0]  # 64
    assert sim.shape == (N, N)
    assert w_fc.shape == (C, C), "forward requires out_channels == in_channels"
    assert w_lin.shape == (H, C)

    hp = jax.lax.Precision.HIGHEST
    # Fuse the two linear layers once, outside the hot path:
    #   emb @ W_fc.T @ W_lin.T == emb @ (W_lin @ W_fc).T
    w_fused = jnp.dot(jnp.asarray(w_lin, jnp.float32),
                      jnp.asarray(w_fc, jnp.float32), precision=hp).T   # (C, H)
    lin_bias2d = jnp.asarray(lin_bias, jnp.float32).reshape(1, H)
    bias2d = jnp.asarray(bias, jnp.float32).reshape(1, H)
    alpha2d = jnp.asarray(alpha, jnp.float32).reshape(1, 1)

    emb = jnp.asarray(emb, jnp.float32)
    sim = jnp.asarray(sim, compute_dtype)

    # ---- tile selection & zero padding so the grid divides evenly ----------
    if N <= max(tm, tk):
        tm_, tk_ = N, N          # single tile: full-extent blocks are legal
        n_pad = N
    else:
        tm_, tk_ = tm, tk
        step = math.lcm(tm_, tk_)
        n_pad = ((N + step - 1) // step) * step

    if n_pad != N:
        # Padded sim columns are zero -> padded k-tiles contribute nothing;
        # padded output rows are sliced off below.
        sim = jnp.pad(sim, ((0, n_pad - N), (0, n_pad - N)))
        emb = jnp.pad(emb, ((0, n_pad - N), (0, 0)))

    grid = (n_pad // tm_, n_pad // tk_)

    flops = 2 * n_pad * n_pad * H + 2 * grid[0] * n_pad * C * H
    bytes_accessed = (sim.dtype.itemsize * n_pad * n_pad
                      + 4 * grid[0] * n_pad * C
                      + 4 * n_pad * H
                      + 4 * C * H)
    cost = pl.CostEstimate(flops=flops, transcendentals=0,
                           bytes_accessed=bytes_accessed)

    grid_spec = pltpu.PrefetchScalarGridSpec(
        num_scalar_prefetch=0,
        grid=grid,
        in_specs=[
            pl.BlockSpec((tm_, tk_), lambda i, k: (i, k)),   # sim tile (streamed)
            pl.BlockSpec((tk_, C), lambda i, k: (k, 0)),     # emb k-tile
            pl.BlockSpec((C, H), lambda i, k: (0, 0)),       # fused weight
            pl.BlockSpec((1, H), lambda i, k: (0, 0)),       # lin bias
            pl.BlockSpec((1, H), lambda i, k: (0, 0)),       # gcn bias
            pl.BlockSpec((1, 1), lambda i, k: (0, 0),
                         memory_space=pltpu.MemorySpace.SMEM),  # PReLU alpha
        ],
        out_specs=pl.BlockSpec((tm_, H), lambda i, k: (i, 0)),
        scratch_shapes=[pltpu.VMEM((tm_, H), jnp.float32)],
    )

    out = pl.pallas_call(
        _gcn_sim_kernel,
        out_shape=jax.ShapeDtypeStruct((n_pad, H), jnp.float32),
        grid_spec=grid_spec,
        compiler_params=pltpu.CompilerParams(
            dimension_semantics=("parallel", "arbitrary"),
            vmem_limit_bytes=vmem_limit_bytes),
        cost_estimate=cost,
    )(sim, emb, w_fused, lin_bias2d, bias2d, alpha2d)

    return out[:N]


def _xavier_normal(key, shape, gain):
    # torch xavier_normal_: std = gain * sqrt(2 / (fan_in + fan_out));
    # nn.Linear weights have shape (fan_out, fan_in).
    fan_out, fan_in = shape
    std = gain * math.sqrt(2.0 / (fan_in + fan_out))
    return std * jax.random.normal(key, shape, dtype=jnp.float32)


def reference_forward(emb, sim, w_fc, w_lin, lin_bias, bias, alpha):
    hp = jax.lax.Precision.HIGHEST
    h = jnp.dot(emb, w_fc.T, precision=hp)
    h = jnp.dot(h, w_lin.T, precision=hp) + lin_bias
    o = jnp.dot(sim, h, precision=hp) + bias
    return jnp.where(o >= 0.0, o, alpha * o)


if __name__ == "__main__":
    key = jax.random.PRNGKey(0)
    gain = 1.414
    alpha = jnp.float32(0.25)  # PReLU default init

    # --- Test 1: module-faithful small shapes (single-tile path) -------------
    N, C = 8, 32  # N nodes, in_channels == out_channels
    k_emb, k_sim, k_fc, k_lin, key = jax.random.split(key, 5)
    emb = jax.random.normal(k_emb, (N, C), dtype=jnp.float32)
    sim = jax.random.uniform(k_sim, (N, N), dtype=jnp.float32)
    w_fc = _xavier_normal(k_fc, (C, C), gain)        # fc.weight  (out_c, in_c)
    w_lin = _xavier_normal(k_lin, (64, C), gain)     # lin.weight (64, in_c)
    lin_bias = jnp.zeros((64,), dtype=jnp.float32)   # lin.bias init -> 0.0
    bias = jnp.zeros((64,), dtype=jnp.float32)       # self.bias init -> 0.0

    out = gcn_sim_forward(emb, sim, w_fc, w_lin, lin_bias, bias, alpha)
    out = jax.block_until_ready(out)
    ref = reference_forward(emb, sim, w_fc, w_lin, lin_bias, bias, alpha)
    assert out.shape == (N, 64)
    assert jnp.allclose(out, ref, atol=1e-4, rtol=1e-4), "test1 mismatch"

    # --- Test 2: gridded multi-tile path, nonzero biases ----------------------
    N2, C2 = 256, 64
    k_emb2, k_sim2, k_fc2, k_lin2, k_lb, k_b = jax.random.split(key, 6)
    emb2 = jax.random.normal(k_emb2, (N2, C2), dtype=jnp.float32)
    sim2 = jax.random.uniform(k_sim2, (N2, N2), dtype=jnp.float32)
    w_fc2 = _xavier_normal(k_fc2, (C2, C2), gain)
    w_lin2 = _xavier_normal(k_lin2, (64, C2), gain)
    lin_bias2 = 0.1 * jax.random.normal(k_lb, (64,), dtype=jnp.float32)
    bias2 = 0.1 * jax.random.normal(k_b, (64,), dtype=jnp.float32)

    out2 = gcn_sim_forward(emb2, sim2, w_fc2, w_lin2, lin_bias2, bias2, alpha,
                           tm=128, tk=128)   # forces a (2, 2) grid
    out2 = jax.block_until_ready(out2)
    ref2 = reference_forward(emb2, sim2, w_fc2, w_lin2, lin_bias2, bias2, alpha)
    assert out2.shape == (N2, 64)
    assert jnp.allclose(out2, ref2, atol=2e-3, rtol=2e-3), "test2 mismatch"

    print("KERNEL_OK")
</pallas_src>

<mosaic_0001>
module attributes {stable_mosaic.version = 11 : i64} {
  func.func @_gcn_sim_kernel(%arg0: i32, %arg1: i32, %arg2: memref<8x8xf32, #tpu.memory_space<vmem>>, %arg3: memref<8x32xf32, #tpu.memory_space<vmem>>, %arg4: memref<32x64xf32, #tpu.memory_space<vmem>>, %arg5: memref<1x64xf32, #tpu.memory_space<vmem>>, %arg6: memref<1x64xf32, #tpu.memory_space<vmem>>, %arg7: memref<1x1xf32, #tpu.memory_space<smem>>, %arg8: memref<8x64xf32, #tpu.memory_space<vmem>>, %arg9: memref<8x64xf32, #tpu.memory_space<vmem>>) attributes {dimension_semantics = [#tpu.dimension_semantics<parallel>, #tpu.dimension_semantics<arbitrary>], iteration_bounds = array<i64: 1, 1>, scalar_prefetch = 0 : i64, scratch_operands = 1 : i64, tpu.core_type = #tpu.core_type<tc>, window_params = [{transform_indices = @transform_0, window_bounds = array<i64: 8, 8>}, {transform_indices = @transform_1, window_bounds = array<i64: 8, 32>}, {pipeline_mode = #tpu.pipeline_mode<synchronous>, transform_indices = @transform_2, window_bounds = array<i64: 32, 64>}, {pipeline_mode = #tpu.pipeline_mode<synchronous>, transform_indices = @transform_3, window_bounds = array<i64: 1, 64>}, {pipeline_mode = #tpu.pipeline_mode<synchronous>, transform_indices = @transform_4, window_bounds = array<i64: 1, 64>}, {transform_indices = @transform_5, window_bounds = array<i64: 1, 1>}, {transform_indices = @transform_6, window_bounds = array<i64: 8, 64>}]} {
    %c0_i32 = arith.constant 0 : i32
    %0 = arith.cmpi eq, %arg1, %c0_i32 : i32
    %1 = arith.extui %0 : i1 to i32
    %c0_i32_0 = arith.constant 0 : i32
    %2 = arith.cmpi ne, %1, %c0_i32_0 : i32
    scf.if %2 {
      %cst_15 = arith.constant 0.000000e+00 : f32
      %17 = vector.broadcast %cst_15 : f32 to vector<8x64xf32>
      %c0_16 = arith.constant 0 : index
      %c0_17 = arith.constant 0 : index
      %18 = vector.load %arg9[%c0_16, %c0_17] : memref<8x64xf32, #tpu.memory_space<vmem>>, vector<8x64xf32>
      tpu.vector_store %arg9[%c0_16, %c0_17], %17 {strides = array<i32>} : memref<8x64xf32, #tpu.memory_space<vmem>>, vector<8x64xf32>,
    } else {
    }
    %c0 = arith.constant 0 : index
    %c0_1 = arith.constant 0 : index
    %3 = vector.load %arg3[%c0, %c0_1] : memref<8x32xf32, #tpu.memory_space<vmem>>, vector<8x32xf32>
    %c0_2 = arith.constant 0 : index
    %c0_3 = arith.constant 0 : index
    %4 = vector.load %arg4[%c0_2, %c0_3] : memref<32x64xf32, #tpu.memory_space<vmem>>, vector<32x64xf32>
    %cst = arith.constant dense<0.000000e+00> : vector<8x64xf32>
    %5 = tpu.matmul %3, %4, %cst {dimension_numbers = #tpu.dot_dimension_numbers<[1], [0], [0], [1], [0, 0, 1, 1], [], []>} : vector<8x32xf32>, vector<32x64xf32>, vector<8x64xf32> -> vector<8x64xf32>
    %c0_4 = arith.constant 0 : index
    %c0_5 = arith.constant 0 : index
    %6 = vector.load %arg5[%c0_4, %c0_5] : memref<1x64xf32, #tpu.memory_space<vmem>>, vector<1x64xf32>
    %7 = vector.broadcast %6 : vector<1x64xf32> to vector<8x64xf32>
    %8 = arith.addf %5, %7 : vector<8x64xf32>
    %c0_6 = arith.constant 0 : index
    %c0_7 = arith.constant 0 : index
    %9 = vector.load %arg9[%c0_6, %c0_7] : memref<8x64xf32, #tpu.memory_space<vmem>>, vector<8x64xf32>
    %c0_8 = arith.constant 0 : index
    %c0_9 = arith.constant 0 : index
    %10 = vector.load %arg2[%c0_8, %c0_9] : memref<8x8xf32, #tpu.memory_space<vmem>>, vector<8x8xf32>
    %cst_10 = arith.constant dense<0.000000e+00> : vector<8x64xf32>
    %11 = tpu.matmul %10, %8, %cst_10 {dimension_numbers = #tpu.dot_dimension_numbers<[1], [0], [0], [1], [0, 0, 1, 1], [], []>} : vector<8x8xf32>, vector<8x64xf32>, vector<8x64xf32> -> vector<8x64xf32>
    %12 = arith.addf %9, %11 : vector<8x64xf32>
    %c0_11 = arith.constant 0 : index
    %c0_12 = arith.constant 0 : index
    %13 = vector.load %arg9[%c0_11, %c0_12] : memref<8x64xf32, #tpu.memory_space<vmem>>, vector<8x64xf32>
    tpu.vector_store %arg9[%c0_11, %c0_12], %12 {strides = array<i32>} : memref<8x64xf32, #tpu.memory_space<vmem>>, vector<8x64xf32>,
    %c0_i32_13 = arith.constant 0 : i32
    %14 = arith.cmpi eq, %arg1, %c0_i32_13 : i32
    %15 = arith.extui %14 : i1 to i32
    %c0_i32_14 = arith.constant 0 : i32
    %16 = arith.cmpi ne, %15, %c0_i32_14 : i32
    scf.if %16 {
      %c0_15 = arith.constant 0 : index
      %c0_16 = arith.constant 0 : index
      %17 = vector.load %arg9[%c0_15, %c0_16] : memref<8x64xf32, #tpu.memory_space<vmem>>, vector<8x64xf32>
      %c0_17 = arith.constant 0 : index
      %c0_18 = arith.constant 0 : index
      %18 = vector.load %arg6[%c0_17, %c0_18] : memref<1x64xf32, #tpu.memory_space<vmem>>, vector<1x64xf32>
      %19 = vector.broadcast %18 : vector<1x64xf32> to vector<8x64xf32>
      %20 = arith.addf %17, %19 : vector<8x64xf32>
      %c0_19 = arith.constant 0 : index
      %c0_20 = arith.constant 0 : index
      %21 = memref.load %arg7[%c0_19, %c0_20] : memref<1x1xf32, #tpu.memory_space<smem>>
      %cst_21 = arith.constant 0.000000e+00 : f32
      %22 = vector.broadcast %cst_21 : f32 to vector<8x64xf32>
      %23 = arith.cmpf oge, %20, %22 : vector<8x64xf32>
      %24 = vector.broadcast %21 : f32 to vector<8x64xf32>
      %25 = arith.mulf %24, %20 : vector<8x64xf32>
      %26 = arith.select %23, %20, %25 : vector<8x64xi1>, vector<8x64xf32>
      %c0_22 = arith.constant 0 : index
      %c0_23 = arith.constant 0 : index
      %27 = vector.load %arg8[%c0_22, %c0_23] : memref<8x64xf32, #tpu.memory_space<vmem>>, vector<8x64xf32>
      tpu.vector_store %arg8[%c0_22, %c0_23], %26 {strides = array<i32>} : memref<8x64xf32, #tpu.memory_space<vmem>>, vector<8x64xf32>,
    } else {
    }
    return
  }
  func.func @transform_0(%arg0: i32, %arg1: i32) -> (i32, i32) {
    %c0_i32 = arith.constant 0 : i32
    return %arg0, %arg1 : i32, i32
  }
  func.func @transform_1(%arg0: i32, %arg1: i32) -> (i32, i32) {
    %c0_i32 = arith.constant 0 : i32
    %c0_i32_0 = arith.constant 0 : i32
    return %arg1, %c0_i32 : i32, i32
  }
  func.func @transform_2(%arg0: i32, %arg1: i32) -> (i32, i32) {
    %c0_i32 = arith.constant 0 : i32
    %c0_i32_0 = arith.constant 0 : i32
    %c0_i32_1 = arith.constant 0 : i32
    return %c0_i32, %c0_i32_0 : i32, i32
  }
  func.func @transform_3(%arg0: i32, %arg1: i32) -> (i32, i32) {
    %c0_i32 = arith.constant 0 : i32
    %c0_i32_0 = arith.constant 0 : i32
    %c0_i32_1 = arith.constant 0 : i32
    return %c0_i32, %c0_i32_0 : i32, i32
  }
  func.func @transform_4(%arg0: i32, %arg1: i32) -> (i32, i32) {
    %c0_i32 = arith.constant 0 : i32
    %c0_i32_0 = arith.constant 0 : i32
    %c0_i32_1 = arith.constant 0 : i32
    return %c0_i32, %c0_i32_0 : i32, i32
  }
  func.func @transform_5(%arg0: i32, %arg1: i32) -> (i32, i32) {
    %c0_i32 = arith.constant 0 : i32
    %c0_i32_0 = arith.constant 0 : i32
    %c0_i32_1 = arith.constant 0 : i32
    return %c0_i32, %c0_i32_0 : i32, i32
  }
  func.func @transform_6(%arg0: i32, %arg1: i32) -> (i32, i32) {
    %c0_i32 = arith.constant 0 : i32
    %c0_i32_0 = arith.constant 0 : i32
    return %arg0, %c0_i32 : i32, i32
  }
}

</mosaic_0001>

<llo_original>
// kernel: tpu_custom_call.1
$region0: #{tpu_custom_call.1}
  #allocation0 [shape = 'u32[]', space=smem, size = 0x4, offset = 0x4, fixed_abs, tag = 'smem constant byte address 0x4 - core index']
  #allocation1 [shape = 'u32[72,128]{1,0:T(1,128)}', space=vmem, size = 0x9000, scoped, tag = 'internal scratch']
  #allocation2 [shape = 'f32[8,64]{1,0:T(8,128)}', space=vmem, size = 0x1000, scoped, tag = 'scratch operand']
  #allocation3 [shape = 'f32[1,1]{1,0:T(1,128)S(6)}', space=smem, size = 0x200, scoped, tag = 'scoped memory for tpu_custom_call.1']
  %s0 = inlined_call_operand.hbm [shape: f32[8,8], index: 0, kind: input, shape index: {}]
  %s1 = inlined_call_operand.hbm [shape: f32[8,32], index: 1, kind: input, shape index: {}]
  %s2 = inlined_call_operand.hbm [shape: f32[32,64], index: 2, kind: input, shape index: {}]
  %s3 = inlined_call_operand.vmem [shape: f32[1,64], index: 3, kind: input, shape index: {}]
  %s4 = inlined_call_operand.vmem [shape: f32[1,64], index: 4, kind: input, shape index: {}]
  %s5 = inlined_call_operand.<no memory space> [shape: f32[1,1], index: 5, kind: input, shape index: {}]
  %s6 = inlined_call_operand.hbm [shape: f32[8,64], index: 6, kind: output, shape index: {}]
  %s7 = sld [smem:[#allocation0]]
  $region54: #{tpu_custom_call.1} parent=0
    _
  %s9 = ssub.s32 1, %s7
  %s10 = scalar_select 0, %s9, %s7
  %11 = sst [smem:[#allocation3]] %s5
  $region1: #{tpu_custom_call.1} parent=0
    #allocation4 [shape = 'u8[4096]{0}', space=vmem, size = 0x1000, scoped, tag = 'input window, operand 0, single buffered']
    #allocation5 [shape = 's32[1]{0}', space=sflag, size = 0x4, scoped, tag = 'scoped memory for tpu_custom_call.1']
    #allocation6 [shape = 's32[1]{0}', space=sflag, size = 0x4, scoped, tag = 'scoped memory for tpu_custom_call.1']
    #allocation7 [shape = 'u8[4096]{0}', space=vmem, size = 0x1000, scoped, tag = 'input window, operand 1, single buffered']
    #allocation8 [shape = 's32[1]{0}', space=sflag, size = 0x4, scoped, tag = 'scoped memory for tpu_custom_call.1']
    #allocation9 [shape = 'u8[16384]{0}', space=vmem, size = 0x4000, scoped, tag = 'input window, operand 2, single buffered']
    #allocation10 [shape = 'u8[4096]{0}', space=vmem, size = 0x1000, scoped, tag = 'output window, operand 0, single buffered']
    %12 = vsyncpa [#allocation5], 0
    %13 = vsyncpa [#allocation8], 0
    %14 = vsyncpa [#allocation6], 0
    // Predicated region
    $region2: #{tpu_custom_call.1} parent=1 // pred_check
      _
    $region3: #{tpu_custom_call.1} parent=1 // pred_check_branch
      %16 = sbr.rel (0) target = $region5
    $region4: #{tpu_custom_call.1} parent=1 // pred_region
      %18 = vsyncadd [#allocation5], 0
      %s20 = sshll.u32 %s0, 4
      %s21 = int_to_ptr.hbm [resolvable:$true] %s20
      %s22 = sshll.u32 [#allocation4], 4
      %s23 = int_to_ptr.vmem [resolvable:$true] %s22
      %25 = dma.hbm_to_vmem [thread:$0]  %s21, 128, %s23, [#allocation5]
    $region5: #{tpu_custom_call.1} parent=1 // pred_fallthru
      _
    // Predicated region
    $region6: #{tpu_custom_call.1} parent=1 // pred_check
      _
    $region7: #{tpu_custom_call.1} parent=1 // pred_check_branch
      %27 = sbr.rel (0) target = $region9
    $region8: #{tpu_custom_call.1} parent=1 // pred_region
      %29 = vsyncadd [#allocation8], 0
      %s31 = sshll.u32 %s1, 4
      %s32 = int_to_ptr.hbm [resolvable:$true] %s31
      %s33 = sshll.u32 [#allocation7], 4
      %s34 = int_to_ptr.vmem [resolvable:$true] %s33
      %36 = dma.hbm_to_vmem [thread:$0]  %s32, 128, %s34, [#allocation8]
    $region9: #{tpu_custom_call.1} parent=1 // pred_fallthru
      _
    // Predicated region
    $region10: #{tpu_custom_call.1} parent=1 // pred_check
      _
    $region11: #{tpu_custom_call.1} parent=1 // pred_check_branch
      %38 = sbr.rel (0) target = $region13
    $region12: #{tpu_custom_call.1} parent=1 // pred_region
      %40 = vsyncadd [#allocation8], 0
      %s41 = sshll.u32 %s2, 4
      %s42 = int_to_ptr.hbm [resolvable:$true] %s41
      %s43 = sshll.u32 [#allocation9], 4
      %s44 = int_to_ptr.vmem [resolvable:$true] %s43
      %49 = dma.hbm_to_vmem [thread:$0]  %s42, 512, %s44, [#allocation8], 128, 128, 8
    $region13: #{tpu_custom_call.1} parent=1 // pred_fallthru
      _
    // Predicated region
    $region14: #{tpu_custom_call.1} parent=1 // pred_check
      _
    $region15: #{tpu_custom_call.1} parent=1 // pred_check_branch
      %51 = sbr.rel (0) target = $region17
    $region16: #{tpu_custom_call.1} parent=1 // pred_region
      _
    $region17: #{tpu_custom_call.1} parent=1 // pred_fallthru
      _
    // Predicated region
    $region18: #{tpu_custom_call.1} parent=1 // pred_check
      _
    $region19: #{tpu_custom_call.1} parent=1 // pred_check_branch
      %53 = sbr.rel (0) target = $region21
    $region20: #{tpu_custom_call.1} parent=1 // pred_region
      _
    $region21: #{tpu_custom_call.1} parent=1 // pred_fallthru
      _
    // Predicated region
    $region22: #{tpu_custom_call.1} parent=1 // pred_check
      _
    $region23: #{tpu_custom_call.1} parent=1 // pred_check_branch
      %55 = sbr.rel (0) target = $region25
    $region24: #{tpu_custom_call.1} parent=1 // pred_region
      _
    $region25: #{tpu_custom_call.1} parent=1 // pred_fallthru
      _
    // Predicated region
    $region26: #{tpu_custom_call.1} parent=1 // pred_check
      _
    $region27: #{tpu_custom_call.1} parent=1 // pred_check_branch
      %57 = sbr.rel (0) target = $region29
    $region28: #{tpu_custom_call.1} parent=1 // pred_region
      %59 = dma.done [#allocation5], 128
    $region29: #{tpu_custom_call.1} parent=1 // pred_fallthru
      _
    // Predicated region
    $region30: #{tpu_custom_call.1} parent=1 // pred_check
      _
    $region31: #{tpu_custom_call.1} parent=1 // pred_check_branch
      %61 = sbr.rel (0) target = $region33
    $region32: #{tpu_custom_call.1} parent=1 // pred_region
      %63 = dma.done [#allocation8], 128
    $region33: #{tpu_custom_call.1} parent=1 // pred_fallthru
      _
    // Predicated region
    $region34: #{tpu_custom_call.1} parent=1 // pred_check
      _
    $region35: #{tpu_custom_call.1} parent=1 // pred_check_branch
      %65 = sbr.rel (0) target = $region37
    $region36: #{tpu_custom_call.1} parent=1 // pred_region
      %67 = dma.done [#allocation8], 512
    $region37: #{tpu_custom_call.1} parent=1 // pred_fallthru
      _
    %p68 = scmp.eq.s32.totalorder 0, 0
    // Predicated region
    $region38: #{tpu_custom_call.1} parent=1 // pred_check
      %p69 = pneg %p68
    $region39: #{tpu_custom_call.1} parent=1 // pred_check_branch
      %71 = sbr.rel (%p69) target = $region41
    $region40: #{tpu_custom_call.1} parent=1 // pred_region
      %vm72 = vcmask 523264
      %73 = vst.msk [vmem:[#allocation2] sm:$0xff] %vm72, 0.0
    $region41: #{tpu_custom_call.1} parent=1 // pred_fallthru
      _
    %v74 = vld [vmem:[#allocation7] sm:$0xff]
    %v75 = vld [vmem:[#allocation9] sm:$0xff]
    %v76 = vld [vmem:[#allocation9 + $0x8] sm:$0xff]
    %v77 = vld [vmem:[#allocation9 + $0x10] sm:$0xff]
    %v78 = vld [vmem:[#allocation9 + $0x18] sm:$0xff]
    %v79 = vld [vmem:[%s3] sm:$0x1]
    %v81 = vperm.slane %v79, 0
    %vm83 = vcmask 261120
    %v85 = vsel %vm83, %v74, 0
    %87 = vmatpush.msra.mxu0 0.0
    %88 = vmatpush.msra.mxu0 0.0
    %89 = vmatpush.msra.mxu0 0.0
    %90 = vmatpush.msra.mxu0 0.0
    %91 = vmatpush.msra.mxu0 0.0
    %92 = vmatpush.msra.mxu0 0.0
    %93 = vmatpush.msra.mxu0 0.0
    %94 = vmatpush.msra.mxu0 0.0
    %95 = vmatpush.msra.mxu0 0.0
    %96 = vmatpush.msra.mxu0 0.0
    %97 = vmatpush.msra.mxu0 0.0
    %98 = vmatpush.msra.mxu0 0.0
    %99 = vmatpush.msra.mxu0 %v78
    %100 = vmatpush.msra.mxu0 %v77
    %101 = vmatpush.msra.mxu0 %v76
    %102 = vmatpush.msra.mxu0 %v75
    %103 = vmatmul.f32.gmra.mxu0 %v85
    %v104 = vpop.f32.mrf.mxu0
    %v105 = vadd.f32 %v81, %v104
    %106 = vdwg.mxu0
    %v107 = vld [vmem:[#allocation2] sm:$0xff]
    %v108 = vld [vmem:[#allocation4] sm:$0xff]
    %vm109 = vcmask 64512
    %v111 = vsel %vm109, %v108, 0
    %113 = vmatpush.msra.mxu0 0.0
    %114 = vmatpush.msra.mxu0 0.0
    %115 = vmatpush.msra.mxu0 0.0
    %116 = vmatpush.msra.mxu0 0.0
    %117 = vmatpush.msra.mxu0 0.0
    %118 = vmatpush.msra.mxu0 0.0
    %119 = vmatpush.msra.mxu0 0.0
    %120 = vmatpush.msra.mxu0 0.0
    %121 = vmatpush.msra.mxu0 0.0
    %122 = vmatpush.msra.mxu0 0.0
    %123 = vmatpush.msra.mxu0 0.0
    %124 = vmatpush.msra.mxu0 0.0
    %125 = vmatpush.msra.mxu0 0.0
    %126 = vmatpush.msra.mxu0 0.0
    %127 = vmatpush.msra.mxu0 0.0
    %128 = vmatpush.msra.mxu0 %v105
    %129 = vmatmul.f32.gmra.mxu0 %v111
    %v130 = vpop.f32.mrf.mxu0
    %v131 = vadd.f32 0.0, %v130
    %132 = vdwg.mxu0
    %v133 = vadd.f32 %v107, %v131
    %vm134 = vcmask 523264
    %135 = vst.msk [vmem:[#allocation2] sm:$0xff] %vm134, %v133
    // Predicated region
    $region42: #{tpu_custom_call.1} parent=1 // pred_check
      %p136 = pneg %p68
    $region43: #{tpu_custom_call.1} parent=1 // pred_check_branch
      %138 = sbr.rel (%p136) target = $region45
    $region44: #{tpu_custom_call.1} parent=1 // pred_region
      %v139 = vld [vmem:[#allocation2] sm:$0xff]
      %v140 = vld [vmem:[%s4] sm:$0x1]
      %v142 = vperm.slane %v140, 0
      %v144 = vadd.f32 %v139, %v142
      %s145 = sld [smem:[#allocation3]]
      %vm146 = vcmp.ge.f32.partialorder %v144, 0.0
      %v147 = vstv %s145
      %v148 = vmul.f32 %v147, %v144
      %v149 = vsel %vm146, %v144, %v148
      %150 = vst.msk [vmem:[#allocation10] sm:$0xff] %vm134, %v149
    $region45: #{tpu_custom_call.1} parent=1 // pred_fallthru
      _
    // Predicated region
    $region46: #{tpu_custom_call.1} parent=1 // pred_check
      _
    $region47: #{tpu_custom_call.1} parent=1 // pred_check_branch
      %152 = sbr.rel (0) target = $region49
    $region48: #{tpu_custom_call.1} parent=1 // pred_region
      %154 = vsyncadd [#allocation6], 0
      %s156 = sshll.u32 [#allocation10], 4
      %s157 = int_to_ptr.vmem [resolvable:$true] %s156
      %s158 = sshll.u32 %s6, 4
      %s159 = int_to_ptr.hbm [resolvable:$true] %s158
      %161 = dma.vmem_to_hbm [thread:$0]  %s157, 128, %s159, [#allocation6]
    $region49: #{tpu_custom_call.1} parent=1 // pred_fallthru
      _
    // Predicated region
    $region50: #{tpu_custom_call.1} parent=1 // pred_check
      _
    $region51: #{tpu_custom_call.1} parent=1 // pred_check_branch
      %163 = sbr.rel (0) target = $region53
    $region52: #{tpu_custom_call.1} parent=1 // pred_region
      %165 = dma.done [#allocation6], 128
    $region53: #{tpu_custom_call.1} parent=1 // pred_fallthru
      _
    %166 = vsyncpa [#allocation5], 1
    %167 = vsyncpa [#allocation8], 1
    %168 = vsyncpa [#allocation6], 1

</llo_original>
